<compile_context>
chip_gen: v7x
topology: tpu7x:2x2x1
jax: 0.10.0
libtpu: 0.0.40
codegen_flags: <defaults>
</compile_context>

<pallas_src>
import numpy as np

import jax
import jax.numpy as jnp
from jax.experimental import pallas as pl
from jax.experimental.pallas import tpu as pltpu


# ----------------------------- kernel ----------------------------------------

def _rope_kernel(x_ref, cos_ref, sin_ref, o_ref):
    # x_ref/o_ref: (Bb, ts, D);  cos_ref/sin_ref: (ts, D) float32.
    # sin_ref already carries the rotate_half sign ([-1]*half ++ [+1]*half),
    # so rotating with [x2, x1] is sufficient.
    x = x_ref[...].astype(jnp.float32)                     # (Bb, ts, D)
    half = x.shape[-1] // 2
    x_rot = jnp.concatenate([x[..., half:], x[..., :half]], axis=-1)
    out = x * cos_ref[...] + x_rot * sin_ref[...]          # (ts,D) broadcasts over Bb
    o_ref[...] = out.astype(o_ref.dtype)


# ----------------------------- table cache -----------------------------------

_TABLE_CACHE = {}


def _rope_tables(S, D, base):
    """Cached (cos, signed-sin) tables, float32, shape (S, D)."""
    key = (int(S), int(D), float(base))
    if key not in _TABLE_CACHE:
        half = D // 2
        theta = 1.0 / (base ** (np.arange(0, D, 2, dtype=np.float32) / np.float32(D)))
        seq_idx = np.arange(S, dtype=np.float32)
        freqs = np.outer(seq_idx, theta)                     # (S, D/2)
        positions = np.concatenate([freqs, freqs], axis=-1)  # (S, D)
        cos = np.cos(positions).astype(np.float32)
        # rotate_half(x) = [-x2, x1]; [x2, x1] is used in-kernel -> fold sign into sin.
        sign = np.concatenate(
            [-np.ones((half,), np.float32), np.ones((half,), np.float32)]
        )
        sin = (np.sin(positions) * sign).astype(np.float32)
        _TABLE_CACHE[key] = (jnp.asarray(cos), jnp.asarray(sin))
    return _TABLE_CACHE[key]


# ----------------------------- tiling helpers ---------------------------------

def _device_vmem_params():
    """(target block bytes, scoped vmem limit) per TPU generation."""
    kind = ""
    try:
        kind = jax.devices()[0].device_kind.lower()
    except Exception:
        pass
    if "v7" in kind:
        # v7x: 64 MiB physical VMEM -> smaller blocks, tighter scoped limit.
        return 2 * 1024 * 1024, 48 * 1024 * 1024
    # v5e / v6e: 128 MiB physical VMEM.
    return 4 * 1024 * 1024, 64 * 1024 * 1024


def _pick_block(B, S, D, itemsize, target_bytes):
    """Pick (Bb, ts): ts a sublane-aligned divisor of S, Bb a divisor of B,
    with Bb*ts*D*itemsize as close to target_bytes as possible (from below)."""
    pack = max(8, 32 // itemsize)          # 8 for f32, 16 for bf16, 32 for int8
    row_bytes = D * itemsize

    ts = 0
    limit = min(S, max(pack, target_bytes // max(1, row_bytes)))
    for cand in range(pack, limit + 1, pack):
        if S % cand == 0:
            ts = cand
    if ts == 0:
        # No aligned divisor fits the target: smallest aligned divisor, else full S.
        ts = next((c for c in range(pack, S + 1, pack) if S % c == 0), S)

    bb = 1
    for cand in range(1, B + 1):
        if B % cand == 0 and cand * ts * row_bytes <= target_bytes:
            bb = cand
    return bb, ts


# ----------------------------- wrapper ----------------------------------------

def rotary_positional_embedding(x, embed_dim, base=10000.0):
    """x: (B, S, D) float array; returns same shape/dtype as x."""
    B, S, D = x.shape
    assert D == embed_dim and D % 2 == 0
    itemsize = jnp.dtype(x.dtype).itemsize

    cos, sin = _rope_tables(S, D, base)                     # float32 (S, D)

    target_bytes, vmem_limit = _device_vmem_params()
    bb, ts = _pick_block(B, S, D, itemsize, target_bytes)

    cost = pl.CostEstimate(
        flops=3 * B * S * D,                                # 2 mul + 1 add / elem
        transcendentals=0,                                  # tables built host-side
        bytes_accessed=2 * B * S * D * itemsize + 2 * S * D * 4,
    )

    return pl.pallas_call(
        _rope_kernel,
        out_shape=jax.ShapeDtypeStruct((B, S, D), x.dtype),
        grid_spec=pltpu.PrefetchScalarGridSpec(
            num_scalar_prefetch=0,
            # Batch sweep innermost: cos/sin block index is constant across it,
            # so the tables are not re-DMA'd per batch block.
            grid=(S // ts, B // bb),
            in_specs=[
                pl.BlockSpec((bb, ts, D), lambda s, b: (b, s, 0)),
                pl.BlockSpec((ts, D), lambda s, b: (s, 0)),
                pl.BlockSpec((ts, D), lambda s, b: (s, 0)),
            ],
            out_specs=pl.BlockSpec((bb, ts, D), lambda s, b: (b, s, 0)),
        ),
        compiler_params=pltpu.CompilerParams(
            dimension_semantics=("parallel", "parallel"),
            vmem_limit_bytes=vmem_limit,
        ),
        cost_estimate=cost,
    )(x, cos, sin)


# ----------------------------- reference --------------------------------------

def rope_reference(x, embed_dim, base=10000.0):
    # Pure-JAX reference mirroring the PyTorch forward exactly.
    B, S, D = x.shape
    theta = 1.0 / (base ** (jnp.arange(0, D, 2, dtype=jnp.float32) / D))
    seq_idx = jnp.arange(S, dtype=jnp.float32)
    freqs = jnp.einsum("i,j->ij", seq_idx, theta)
    positions = jnp.concatenate([freqs, freqs], axis=-1)
    half = D // 2
    x1, x2 = x[..., :half], x[..., half:]
    x_rot = jnp.concatenate([-x2, x1], axis=-1)
    return (x * jnp.cos(positions) + x_rot * jnp.sin(positions)).astype(x.dtype)


if __name__ == "__main__":
    key0, key1 = jax.random.split(jax.random.PRNGKey(0))

    # Small shape implied by the module's forward: (batch, seq, embed_dim).
    B, S, D = 2, 8, 32
    x = jax.random.normal(key0, (B, S, D), dtype=jnp.float32)
    out = jax.block_until_ready(rotary_positional_embedding(x, embed_dim=D))
    ref = rope_reference(x, embed_dim=D)
    assert out.shape == (B, S, D) and out.dtype == x.dtype
    assert jnp.allclose(out, ref, atol=1e-5, rtol=1e-5), "mismatch (D=32)"

    # Second small case with a lane-aligned embed dim (free vreg-level rotate).
    B2, S2, D2 = 2, 8, 256
    x2 = jax.random.normal(key1, (B2, S2, D2), dtype=jnp.float32)
    out2 = jax.block_until_ready(rotary_positional_embedding(x2, embed_dim=D2))
    ref2 = rope_reference(x2, embed_dim=D2)
    assert out2.shape == (B2, S2, D2) and out2.dtype == x2.dtype
    assert jnp.allclose(out2, ref2, atol=1e-5, rtol=1e-5), "mismatch (D=256)"

    print("KERNEL_OK")
</pallas_src>

<mosaic_0001>
module attributes {stable_mosaic.version = 11 : i64} {
  func.func @_rope_kernel(%arg0: i32, %arg1: i32, %arg2: memref<2x8x32xf32, #tpu.memory_space<vmem>>, %arg3: memref<8x32xf32, #tpu.memory_space<vmem>>, %arg4: memref<8x32xf32, #tpu.memory_space<vmem>>, %arg5: memref<2x8x32xf32, #tpu.memory_space<vmem>>) attributes {dimension_semantics = [#tpu.dimension_semantics<parallel>, #tpu.dimension_semantics<parallel>], iteration_bounds = array<i64: 1, 1>, scalar_prefetch = 0 : i64, scratch_operands = 0 : i64, tpu.core_type = #tpu.core_type<tc>, window_params = [{transform_indices = @transform_0, window_bounds = array<i64: 2, 8, 32>}, {transform_indices = @transform_1, window_bounds = array<i64: 8, 32>}, {transform_indices = @transform_2, window_bounds = array<i64: 8, 32>}, {transform_indices = @transform_3, window_bounds = array<i64: 2, 8, 32>}]} {
    %c0 = arith.constant 0 : index
    %c0_0 = arith.constant 0 : index
    %c0_1 = arith.constant 0 : index
    %0 = vector.load %arg2[%c0, %c0_0, %c0_1] : memref<2x8x32xf32, #tpu.memory_space<vmem>>, vector<2x8x32xf32>
    %1 = vector.extract_strided_slice %0 {offsets = [0, 0, 16], sizes = [2, 8, 16], strides = [1, 1, 1]} : vector<2x8x32xf32> to vector<2x8x16xf32>
    %2 = vector.extract_strided_slice %0 {offsets = [0, 0, 0], sizes = [2, 8, 16], strides = [1, 1, 1]} : vector<2x8x32xf32> to vector<2x8x16xf32>
    %3 = tpu.concatenate %1, %2 in 2 : vector<2x8x16xf32>, vector<2x8x16xf32> -> vector<2x8x32xf32>
    %c0_2 = arith.constant 0 : index
    %c0_3 = arith.constant 0 : index
    %4 = vector.load %arg3[%c0_2, %c0_3] : memref<8x32xf32, #tpu.memory_space<vmem>>, vector<8x32xf32>
    %5 = vector.shape_cast %4 : vector<8x32xf32> to vector<1x8x32xf32>
    %6 = vector.broadcast %5 : vector<1x8x32xf32> to vector<2x8x32xf32>
    %7 = arith.mulf %0, %6 : vector<2x8x32xf32>
    %c0_4 = arith.constant 0 : index
    %c0_5 = arith.constant 0 : index
    %8 = vector.load %arg4[%c0_4, %c0_5] : memref<8x32xf32, #tpu.memory_space<vmem>>, vector<8x32xf32>
    %9 = vector.shape_cast %8 : vector<8x32xf32> to vector<1x8x32xf32>
    %10 = vector.broadcast %9 : vector<1x8x32xf32> to vector<2x8x32xf32>
    %11 = arith.mulf %3, %10 : vector<2x8x32xf32>
    %12 = arith.addf %7, %11 : vector<2x8x32xf32>
    %c0_6 = arith.constant 0 : index
    %c0_7 = arith.constant 0 : index
    %c0_8 = arith.constant 0 : index
    %13 = vector.load %arg5[%c0_6, %c0_7, %c0_8] : memref<2x8x32xf32, #tpu.memory_space<vmem>>, vector<2x8x32xf32>
    tpu.vector_store %arg5[%c0_6, %c0_7, %c0_8], %12 {strides = array<i32>} : memref<2x8x32xf32, #tpu.memory_space<vmem>>, vector<2x8x32xf32>,
    return
  }
  func.func @transform_0(%arg0: i32, %arg1: i32) -> (i32, i32, i32) {
    %c0_i32 = arith.constant 0 : i32
    %c0_i32_0 = arith.constant 0 : i32
    return %arg1, %arg0, %c0_i32 : i32, i32, i32
  }
  func.func @transform_1(%arg0: i32, %arg1: i32) -> (i32, i32) {
    %c0_i32 = arith.constant 0 : i32
    %c0_i32_0 = arith.constant 0 : i32
    return %arg0, %c0_i32 : i32, i32
  }
  func.func @transform_2(%arg0: i32, %arg1: i32) -> (i32, i32) {
    %c0_i32 = arith.constant 0 : i32
    %c0_i32_0 = arith.constant 0 : i32
    return %arg0, %c0_i32 : i32, i32
  }
  func.func @transform_3(%arg0: i32, %arg1: i32) -> (i32, i32, i32) {
    %c0_i32 = arith.constant 0 : i32
    %c0_i32_0 = arith.constant 0 : i32
    return %arg1, %arg0, %c0_i32 : i32, i32, i32
  }
}

</mosaic_0001>

<llo_original>
// kernel: tpu_custom_call.1
$region0: #{tpu_custom_call.1}
  #allocation0 [shape = 'u32[]', space=smem, size = 0x4, offset = 0x4, fixed_abs, tag = 'smem constant byte address 0x4 - core index']
  #allocation1 [shape = 'u32[144,128]{1,0:T(1,128)}', space=vmem, size = 0x12000, scoped, tag = 'internal scratch']
  %s0 = inlined_call_operand.hbm [shape: f32[2,8,32], index: 0, kind: input, shape index: {}]
  %s1 = inlined_call_operand.hbm [shape: f32[8,32], index: 1, kind: input, shape index: {}]
  %s2 = inlined_call_operand.hbm [shape: f32[8,32], index: 2, kind: input, shape index: {}]
  %s3 = inlined_call_operand.hbm [shape: f32[2,8,32], index: 3, kind: output, shape index: {}]
  %s4 = sld [smem:[#allocation0]]
  $region34: #{tpu_custom_call.1} parent=0
    _
  %s6 = ssub.s32 1, %s4
  %s7 = scalar_select 0, %s6, %s4
  $region1: #{tpu_custom_call.1} parent=0
    #allocation2 [shape = 'u8[8192]{0}', space=vmem, size = 0x2000, scoped, tag = 'input window, operand 0, single buffered']
    #allocation3 [shape = 's32[1]{0}', space=sflag, size = 0x4, scoped, tag = 'scoped memory for tpu_custom_call.1']
    #allocation4 [shape = 's32[1]{0}', space=sflag, size = 0x4, scoped, tag = 'scoped memory for tpu_custom_call.1']
    #allocation5 [shape = 'u8[4096]{0}', space=vmem, size = 0x1000, scoped, tag = 'input window, operand 1, single buffered']
    #allocation6 [shape = 's32[1]{0}', space=sflag, size = 0x4, scoped, tag = 'scoped memory for tpu_custom_call.1']
    #allocation7 [shape = 'u8[4096]{0}', space=vmem, size = 0x1000, scoped, tag = 'input window, operand 2, single buffered']
    #allocation8 [shape = 'u8[8192]{0}', space=vmem, size = 0x2000, scoped, tag = 'output window, operand 0, single buffered']
    %8 = vsyncpa [#allocation3], 0
    %9 = vsyncpa [#allocation6], 0
    %10 = vsyncpa [#allocation4], 0
    // Predicated region
    $region2: #{tpu_custom_call.1} parent=1 // pred_check
      _
    $region3: #{tpu_custom_call.1} parent=1 // pred_check_branch
      %12 = sbr.rel (0) target = $region5
    $region4: #{tpu_custom_call.1} parent=1 // pred_region
      %s14 = ssub.s32 256, 256
      %15 = vsyncadd [#allocation3], %s14
      %s16 = sshll.u32 [#allocation2], 4
      %s17 = int_to_ptr.vmem [resolvable:$true] %s16
      %22 = dma.hbm_to_vmem [thread:$0]  %s0, 256, %s17, [#allocation3], 128, 128, 8
    $region5: #{tpu_custom_call.1} parent=1 // pred_fallthru
      _
    // Predicated region
    $region6: #{tpu_custom_call.1} parent=1 // pred_check
      _
    $region7: #{tpu_custom_call.1} parent=1 // pred_check_branch
      %24 = sbr.rel (0) target = $region9
    $region8: #{tpu_custom_call.1} parent=1 // pred_region
      %s26 = ssub.s32 128, 128
      %27 = vsyncadd [#allocation6], %s26
      %s29 = sshll.u32 [#allocation5], 4
      %s30 = int_to_ptr.vmem [resolvable:$true] %s29
      %32 = dma.hbm_to_vmem [thread:$0]  %s1, 128, %s30, [#allocation6]
    $region9: #{tpu_custom_call.1} parent=1 // pred_fallthru
      _
    // Predicated region
    $region10: #{tpu_custom_call.1} parent=1 // pred_check
      _
    $region11: #{tpu_custom_call.1} parent=1 // pred_check_branch
      %34 = sbr.rel (0) target = $region13
    $region12: #{tpu_custom_call.1} parent=1 // pred_region
      %s36 = ssub.s32 128, 128
      %37 = vsyncadd [#allocation6], %s36
      %s39 = sshll.u32 [#allocation7], 4
      %s40 = int_to_ptr.vmem [resolvable:$true] %s39
      %42 = dma.hbm_to_vmem [thread:$0]  %s2, 128, %s40, [#allocation6]
    $region13: #{tpu_custom_call.1} parent=1 // pred_fallthru
      _
    // Predicated region
    $region14: #{tpu_custom_call.1} parent=1 // pred_check
      _
    $region15: #{tpu_custom_call.1} parent=1 // pred_check_branch
      %44 = sbr.rel (0) target = $region17
    $region16: #{tpu_custom_call.1} parent=1 // pred_region
      %45 = dma.done [#allocation3], 256
    $region17: #{tpu_custom_call.1} parent=1 // pred_fallthru
      _
    // Predicated region
    $region18: #{tpu_custom_call.1} parent=1 // pred_check
      _
    $region19: #{tpu_custom_call.1} parent=1 // pred_check_branch
      %47 = sbr.rel (0) target = $region21
    $region20: #{tpu_custom_call.1} parent=1 // pred_region
      %48 = dma.done [#allocation6], 128
    $region21: #{tpu_custom_call.1} parent=1 // pred_fallthru
      _
    // Predicated region
    $region22: #{tpu_custom_call.1} parent=1 // pred_check
      _
    $region23: #{tpu_custom_call.1} parent=1 // pred_check_branch
      %50 = sbr.rel (0) target = $region25
    $region24: #{tpu_custom_call.1} parent=1 // pred_region
      %51 = dma.done [#allocation6], 128
    $region25: #{tpu_custom_call.1} parent=1 // pred_fallthru
      _
    %v52 = vld [vmem:[#allocation2] sm:$0xff]
    %v53 = vld [vmem:[#allocation2 + $0x8] sm:$0xff]
    %56 = vrot.lane.b32.xlu0 %v52, 112
    %v57 = vpop.permute.xlu0 %56
    %58 = vrot.lane.b32.xlu0 %v53, 112
    %v59 = vpop.permute.xlu0 %58
    %62 = vrot.lane.b32.xlu0 %v52, 16
    %v63 = vpop.permute.xlu0 %62
    %64 = vrot.lane.b32.xlu0 %v53, 16
    %v65 = vpop.permute.xlu0 %64
    %vm68 = vcmask 130048
    %v69 = vsel %vm68, %v57, %v63
    %v70 = vsel %vm68, %v59, %v65
    %v71 = vld [vmem:[#allocation5] sm:$0xff]
    %v72 = vmul.f32 %v52, %v71
    %v73 = vmul.f32 %v53, %v71
    %v74 = vld [vmem:[#allocation7] sm:$0xff]
    %v75 = vmul.f32 %v69, %v74
    %v76 = vmul.f32 %v70, %v74
    %v77 = vadd.f32 %v72, %v75
    %v78 = vadd.f32 %v73, %v76
    %vm79 = vcmask 261120
    %80 = vst.msk [vmem:[#allocation8] sm:$0xff] %vm79, %v77
    %81 = vst.msk [vmem:[#allocation8 + $0x8] sm:$0xff] %vm79, %v78
    // Predicated region
    $region26: #{tpu_custom_call.1} parent=1 // pred_check
      _
    $region27: #{tpu_custom_call.1} parent=1 // pred_check_branch
      %83 = sbr.rel (0) target = $region29
    $region28: #{tpu_custom_call.1} parent=1 // pred_region
      %s85 = ssub.s32 256, 256
      %86 = vsyncadd [#allocation4], %s85
      %s87 = sshll.u32 [#allocation8], 4
      %s88 = int_to_ptr.vmem [resolvable:$true] %s87
      %93 = dma.vmem_to_hbm [thread:$0]  %s88, 256, %s3, [#allocation4], 128, 128, 8
    $region29: #{tpu_custom_call.1} parent=1 // pred_fallthru
      _
    // Predicated region
    $region30: #{tpu_custom_call.1} parent=1 // pred_check
      _
    $region31: #{tpu_custom_call.1} parent=1 // pred_check_branch
      %95 = sbr.rel (0) target = $region33
    $region32: #{tpu_custom_call.1} parent=1 // pred_region
      %96 = dma.done [#allocation4], 256
    $region33: #{tpu_custom_call.1} parent=1 // pred_fallthru
      _
    %97 = vsyncpa [#allocation3], 1
    %98 = vsyncpa [#allocation6], 1
    %99 = vsyncpa [#allocation4], 1

</llo_original>
